<compile_context>
chip_gen: v7x
topology: tpu7x:2x2x1
jax: 0.10.0
libtpu: 0.0.40
codegen_flags: <defaults>
</compile_context>

<pallas_src>
import functools

import jax
import jax.numpy as jnp
from jax.experimental import pallas as pl
from jax.experimental.pallas import tpu as pltpu


def _round_up(x, m):
    return ((x + m - 1) // m) * m


def _cdiv(a, b):
    return (a + b - 1) // b


def _ls_kernel(pred_ref, tgt_ref, out_ref, acc_ref, *,
               confidence, smooth_val, n_total, batch_tile, n_classes):
    """Unweighted label-smoothing partial-sum kernel."""
    p = pl.program_id(0)
    j = pl.program_id(1)
    n_steps = pl.num_programs(1)

    @pl.when(j == 0)
    def _():
        acc_ref[...] = jnp.zeros_like(acc_ref)

    x = pred_ref[...].astype(jnp.float32)                    # (TN, C)
    tgt = tgt_ref[...]                                       # (TN, 1) int32

    # Row validity (ragged last tile / clamped duplicate block of an uneven
    # partial split).  Only the accumulate is masked: every op below is
    # row-local, so overhang-row garbage cannot contaminate valid rows.
    block_idx = p * n_steps + j
    local_row = jax.lax.broadcasted_iota(jnp.int32, (batch_tile, 1), 0)
    valid = (block_idx * batch_tile + local_row) < n_total   # (TN, 1) bool

    # Per-row log-sum-exp (single transcendental pass over the tile).
    m = jnp.max(x, axis=-1, keepdims=True)
    lse = m + jnp.log(jnp.sum(jnp.exp(x - m), axis=-1, keepdims=True))

    sum_x = jnp.sum(x, axis=-1, keepdims=True)               # (TN, 1)

    # One-hot as a bool mask from a (1, C) lane iota; extract x_t via select+sum.
    cols = jax.lax.broadcasted_iota(jnp.int32, (1, x.shape[-1]), 1)
    onehot = cols == tgt                                     # (TN, C) bool
    x_t = jnp.sum(jnp.where(onehot, x, 0.0), axis=-1, keepdims=True)

    # row_loss = -[ sv * (sum_j x_j - C*lse) + (conf - sv) * (x_t - lse) ]
    row_loss = -(smooth_val * (sum_x - lse * n_classes)
                 + (confidence - smooth_val) * (x_t - lse))

    acc_ref[...] += jnp.sum(jnp.where(valid, row_loss, 0.0))

    @pl.when(j == n_steps - 1)
    def _():
        out_ref[...] = acc_ref[...].reshape(out_ref.shape)   # lane-dense write


def _ls_kernel_weighted(pred_ref, tgt_ref, w_ref, out_ref, acc_ref, *,
                        confidence, smooth_val, n_total, batch_tile):
    """Per-class-weighted label-smoothing partial-sum kernel."""
    p = pl.program_id(0)
    j = pl.program_id(1)
    n_steps = pl.num_programs(1)

    @pl.when(j == 0)
    def _():
        acc_ref[...] = jnp.zeros_like(acc_ref)

    x = pred_ref[...].astype(jnp.float32)                    # (TN, C)
    w = w_ref[...].astype(jnp.float32)                       # (1, C)
    tgt = tgt_ref[...]                                       # (TN, 1) int32

    block_idx = p * n_steps + j
    local_row = jax.lax.broadcasted_iota(jnp.int32, (batch_tile, 1), 0)
    valid = (block_idx * batch_tile + local_row) < n_total   # (TN, 1) bool

    m = jnp.max(x, axis=-1, keepdims=True)
    lse = m + jnp.log(jnp.sum(jnp.exp(x - m), axis=-1, keepdims=True))

    # NOTE: on v6e/v7x this weighted row-sum could be offloaded to the idle
    # MXU as jnp.dot(x, w_col); kept on VPU+XLU here for portability.
    sum_w = jnp.sum(w, axis=-1, keepdims=True)               # (1, 1)
    sum_wx = jnp.sum(x * w, axis=-1, keepdims=True)          # (TN, 1)

    cols = jax.lax.broadcasted_iota(jnp.int32, (1, x.shape[-1]), 1)
    onehot = cols == tgt                                     # (TN, C) bool
    x_t = jnp.sum(jnp.where(onehot, x, 0.0), axis=-1, keepdims=True)
    w_t = jnp.sum(jnp.where(onehot, w, 0.0), axis=-1, keepdims=True)

    # row_loss = -[ sv*(sum_j w_j x_j - lse*sum_w) + (conf-sv)*(w_t x_t - lse w_t) ]
    row_loss = -(smooth_val * (sum_wx - lse * sum_w)
                 + (confidence - smooth_val) * (w_t * x_t - lse * w_t))

    acc_ref[...] += jnp.sum(jnp.where(valid, row_loss, 0.0))

    @pl.when(j == n_steps - 1)
    def _():
        out_ref[...] = acc_ref[...].reshape(out_ref.shape)


def label_smoothing_loss(pred, target, *, classes, smoothing=0.0, weight=None,
                         batch_tile=None, num_partials=1, core_parallel=False):
    """pred: (N, C) f32/bf16, target: (N,) int, weight: optional (C,) per-class."""
    N, C = pred.shape
    assert C == classes
    assert 0.0 <= smoothing < 1.0

    itemsize = jnp.dtype(pred.dtype).itemsize
    row_mult = {4: 8, 2: 16, 1: 32}.get(itemsize, 8)

    if batch_tile is None:
        # Per-row VMEM cost: double-buffered pred + 128-lane-padded target
        # blocks + ~3 live f32 (TN, C) intermediates.  ~20 MiB budget keeps
        # pred buffers in the 2-4 MiB range and well under v7x's 64 MiB.
        vmem_budget = 20 << 20
        per_row = C * (2 * itemsize + 3 * 4) + 2 * 128 * 4
        bt = max(vmem_budget // per_row, row_mult)
        bt = min(bt, _round_up(N, row_mult))
        batch_tile = max(row_mult, (bt // row_mult) * row_mult)
    else:
        batch_tile = max(row_mult, _round_up(batch_tile, row_mult))

    num_tiles = _cdiv(N, batch_tile)
    num_partials = max(1, min(int(num_partials), num_tiles))
    steps = _cdiv(num_tiles, num_partials)
    last_tile = num_tiles - 1

    confidence = 1.0 - float(smoothing)
    smooth_val = float(smoothing) / (classes - 1) if classes > 1 else 0.0

    tgt2d = target.astype(jnp.int32).reshape(N, 1)

    def row_map(p, j):
        # Clamp so a ceil-split's trailing duplicate block stays in bounds;
        # the in-kernel validity mask zeroes its contribution.
        return (jnp.minimum(p * steps + j, last_tile), 0)

    in_specs = [
        pl.BlockSpec((batch_tile, C), row_map),
        pl.BlockSpec((batch_tile, 1), row_map),
    ]
    inputs = [pred, tgt2d]

    if weight is None:
        kernel = functools.partial(
            _ls_kernel, confidence=confidence, smooth_val=smooth_val,
            n_total=N, batch_tile=batch_tile, n_classes=float(C))
        weighted_vmem = 0
    else:
        w2d = weight.astype(jnp.float32).reshape(1, C)
        in_specs.append(pl.BlockSpec((1, C), lambda p, j: (0, 0)))
        inputs.append(w2d)
        kernel = functools.partial(
            _ls_kernel_weighted, confidence=confidence, smooth_val=smooth_val,
            n_total=N, batch_tile=batch_tile)
        weighted_vmem = 2 * 8 * _round_up(C, 128) * 4

    # VMEM accounting: pred dbuf + lane-padded tgt dbuf + ~3 f32 temporaries
    # + weight dbuf + out blocks / accumulator scratch, plus headroom.
    vmem_needed = (2 * batch_tile * C * itemsize
                   + 2 * batch_tile * 128 * 4
                   + 3 * batch_tile * C * 4
                   + weighted_vmem
                   + 4 * 8 * 128 * 4)
    vmem_limit = int(max(vmem_needed + (4 << 20), 16 << 20))

    if core_parallel and num_partials > 1:
        # Only CORE_PARALLEL actually shards a grid axis across v7x's two TCs.
        lead_sem = getattr(pltpu, "CORE_PARALLEL", "parallel")
    else:
        lead_sem = "parallel"

    cost = pl.CostEstimate(
        flops=8 * N * C,
        transcendentals=N * C,
        bytes_accessed=N * C * itemsize + N * 4 + C * 4
        + num_partials * 8 * 128 * 4)

    out = pl.pallas_call(
        kernel,
        out_shape=jax.ShapeDtypeStruct((num_partials, 8, 128), jnp.float32),
        grid_spec=pltpu.PrefetchScalarGridSpec(
            num_scalar_prefetch=0,
            grid=(num_partials, steps),
            in_specs=in_specs,
            out_specs=pl.BlockSpec((1, 8, 128), lambda p, j: (p, 0, 0)),
            scratch_shapes=[pltpu.VMEM((8, 128), jnp.float32)],
        ),
        compiler_params=pltpu.CompilerParams(
            dimension_semantics=(lead_sem, "arbitrary"),
            vmem_limit_bytes=vmem_limit),
        cost_estimate=cost,
    )(*inputs)

    # torch.mean over rows: divide by N (even with per-class weights).
    return jnp.sum(out[:, 0, 0]) / jnp.float32(N)


def _reference(pred, target, *, classes, smoothing, weight):
    logp = jax.nn.log_softmax(pred.astype(jnp.float32), axis=-1)
    if weight is not None:
        logp = logp * weight.astype(jnp.float32)[None, :]
    confidence = 1.0 - smoothing
    sv = smoothing / (classes - 1) if classes > 1 else 0.0
    true_dist = jnp.full_like(logp, sv)
    true_dist = true_dist.at[jnp.arange(pred.shape[0]), target].set(confidence)
    return jnp.mean(jnp.sum(-true_dist * logp, axis=-1))


if __name__ == "__main__":
    key = jax.random.PRNGKey(0)
    k1, k2, k3, k4 = jax.random.split(key, 4)

    # ---- Test 1: small f32 case with per-class weight (single tile) ----
    N, C = 16, 32
    smoothing = 0.1
    pred = jax.random.normal(k1, (N, C), dtype=jnp.float32)
    target = jax.random.randint(k2, (N,), 0, C, dtype=jnp.int32)
    weight = jnp.linspace(0.5, 1.5, C, dtype=jnp.float32)

    loss = jax.block_until_ready(
        label_smoothing_loss(pred, target, classes=C,
                             smoothing=smoothing, weight=weight))
    ref = _reference(pred, target, classes=C, smoothing=smoothing, weight=weight)
    assert jnp.allclose(loss, ref, atol=1e-4, rtol=1e-4), (loss, ref)

    # ---- Test 2: bf16, ragged tile count (5 tiles), 2 partials (ceil split
    #              exercises the clamped duplicate block), unweighted path ----
    N2, C2 = 72, 128
    pred2 = jax.random.normal(k3, (N2, C2), dtype=jnp.float32).astype(jnp.bfloat16)
    target2 = jax.random.randint(k4, (N2,), 0, C2, dtype=jnp.int32)
    loss2 = jax.block_until_ready(
        label_smoothing_loss(pred2, target2, classes=C2, smoothing=0.1,
                             weight=None, batch_tile=16, num_partials=2))
    ref2 = _reference(pred2, target2, classes=C2, smoothing=0.1, weight=None)
    assert jnp.allclose(loss2, ref2, atol=2e-4, rtol=2e-4), (loss2, ref2)

    # ---- Test 3: ragged N, smoothing=0 (pure weighted-less CE), f32 ----
    N3, C3 = 20, 32
    pred3 = jax.random.normal(k1, (N3, C3), dtype=jnp.float32)
    target3 = jax.random.randint(k2, (N3,), 0, C3, dtype=jnp.int32)
    loss3 = jax.block_until_ready(
        label_smoothing_loss(pred3, target3, classes=C3,
                             smoothing=0.0, weight=None, batch_tile=8))
    ref3 = _reference(pred3, target3, classes=C3, smoothing=0.0, weight=None)
    assert jnp.allclose(loss3, ref3, atol=1e-4, rtol=1e-4), (loss3, ref3)

    print("KERNEL_OK")
</pallas_src>

<mosaic_0001>
module attributes {stable_mosaic.version = 11 : i64} {
  func.func @_ls_kernel_weighted(%arg0: i32, %arg1: i32, %arg2: memref<16x32xf32, #tpu.memory_space<vmem>>, %arg3: memref<16x1xi32, #tpu.memory_space<vmem>>, %arg4: memref<1x32xf32, #tpu.memory_space<vmem>>, %arg5: memref<1x8x128xf32, #tpu.memory_space<vmem>>, %arg6: memref<8x128xf32, #tpu.memory_space<vmem>>) attributes {dimension_semantics = [#tpu.dimension_semantics<parallel>, #tpu.dimension_semantics<arbitrary>], iteration_bounds = array<i64: 1, 1>, scalar_prefetch = 0 : i64, scratch_operands = 1 : i64, tpu.core_type = #tpu.core_type<tc>, window_params = [{transform_indices = @transform_0, window_bounds = array<i64: 16, 32>}, {transform_indices = @transform_1, window_bounds = array<i64: 16, 1>}, {pipeline_mode = #tpu.pipeline_mode<synchronous>, transform_indices = @transform_2, window_bounds = array<i64: 1, 32>}, {transform_indices = @transform_3, window_bounds = array<i64: 1, 8, 128>}]} {
    %c0_i32 = arith.constant 0 : i32
    %0 = arith.cmpi eq, %arg1, %c0_i32 : i32
    %1 = arith.extui %0 : i1 to i32
    %c0_i32_0 = arith.constant 0 : i32
    %2 = arith.cmpi ne, %1, %c0_i32_0 : i32
    scf.if %2 {
      %cst_25 = arith.constant 0.000000e+00 : f32
      %69 = vector.broadcast %cst_25 : f32 to vector<8x128xf32>
      %c0_26 = arith.constant 0 : index
      %c0_27 = arith.constant 0 : index
      %70 = vector.load %arg6[%c0_26, %c0_27] : memref<8x128xf32, #tpu.memory_space<vmem>>, vector<8x128xf32>
      tpu.vector_store %arg6[%c0_26, %c0_27], %69 {strides = array<i32>} : memref<8x128xf32, #tpu.memory_space<vmem>>, vector<8x128xf32>,
    } else {
    }
    %c0 = arith.constant 0 : index
    %c0_1 = arith.constant 0 : index
    %3 = vector.load %arg2[%c0, %c0_1] : memref<16x32xf32, #tpu.memory_space<vmem>>, vector<16x32xf32>
    %c0_2 = arith.constant 0 : index
    %c0_3 = arith.constant 0 : index
    %4 = vector.load %arg4[%c0_2, %c0_3] : memref<1x32xf32, #tpu.memory_space<vmem>>, vector<1x32xf32>
    %c0_4 = arith.constant 0 : index
    %c0_5 = arith.constant 0 : index
    %5 = vector.load %arg3[%c0_4, %c0_5] : memref<16x1xi32, #tpu.memory_space<vmem>>, vector<16x1xi32>
    %c1_i32 = arith.constant 1 : i32
    %6 = arith.muli %arg0, %c1_i32 : i32
    %7 = arith.addi %6, %arg1 : i32
    %8 = tpu.iota {dimensions = array<i32: 0>} : vector<16x1xi32>
    %c16_i32 = arith.constant 16 : i32
    %9 = arith.muli %7, %c16_i32 : i32
    %10 = vector.broadcast %9 : i32 to vector<16x1xi32>
    %11 = arith.addi %10, %8 : vector<16x1xi32>
    %c16_i32_6 = arith.constant 16 : i32
    %12 = vector.broadcast %c16_i32_6 : i32 to vector<16x1xi32>
    %13 = arith.cmpi slt, %11, %12 : vector<16x1xi32>
    %cst = arith.constant dense<0xFF800000> : vector<16xf32>
    %14 = vector.multi_reduction <maximumf>, %3, %cst [1] : vector<16x32xf32> to vector<16xf32>
    %15 = vector.shape_cast %14 : vector<16xf32> to vector<16x1xf32>
    %16 = vector.broadcast %15 : vector<16x1xf32> to vector<16x32xf32>
    %17 = arith.subf %3, %16 : vector<16x32xf32>
    %18 = math.exp %17 : vector<16x32xf32>
    %cst_7 = arith.constant dense<0.000000e+00> : vector<16xf32>
    %19 = vector.multi_reduction <add>, %18, %cst_7 [1] : vector<16x32xf32> to vector<16xf32>
    %20 = vector.shape_cast %19 : vector<16xf32> to vector<16x1xf32>
    %21 = math.log %20 : vector<16x1xf32>
    %22 = arith.addf %15, %21 : vector<16x1xf32>
    %cst_8 = arith.constant dense<0.000000e+00> : vector<1xf32>
    %23 = vector.multi_reduction <add>, %4, %cst_8 [1] : vector<1x32xf32> to vector<1xf32>
    %24 = vector.shape_cast %23 : vector<1xf32> to vector<1x1xf32>
    %25 = vector.broadcast %4 : vector<1x32xf32> to vector<16x32xf32>
    %26 = arith.mulf %3, %25 : vector<16x32xf32>
    %cst_9 = arith.constant dense<0.000000e+00> : vector<16xf32>
    %27 = vector.multi_reduction <add>, %26, %cst_9 [1] : vector<16x32xf32> to vector<16xf32>
    %28 = vector.shape_cast %27 : vector<16xf32> to vector<16x1xf32>
    %29 = tpu.iota {dimensions = array<i32: 1>} : vector<1x32xi32>
    %30 = vector.broadcast %29 : vector<1x32xi32> to vector<16x32xi32>
    %31 = vector.broadcast %5 : vector<16x1xi32> to vector<16x32xi32>
    %32 = arith.cmpi eq, %30, %31 : vector<16x32xi32>
    %cst_10 = arith.constant 0.000000e+00 : f32
    %33 = vector.broadcast %cst_10 : f32 to vector<16x32xf32>
    %34 = arith.select %32, %3, %33 : vector<16x32xi1>, vector<16x32xf32>
    %cst_11 = arith.constant dense<0.000000e+00> : vector<16xf32>
    %35 = vector.multi_reduction <add>, %34, %cst_11 [1] : vector<16x32xf32> to vector<16xf32>
    %36 = vector.shape_cast %35 : vector<16xf32> to vector<16x1xf32>
    %cst_12 = arith.constant 0.000000e+00 : f32
    %37 = vector.shape_cast %4 : vector<1x32xf32> to vector<1x32xf32>
    %38 = vector.broadcast %37 : vector<1x32xf32> to vector<16x32xf32>
    %39 = vector.broadcast %cst_12 : f32 to vector<16x32xf32>
    %40 = arith.select %32, %38, %39 : vector<16x32xi1>, vector<16x32xf32>
    %cst_13 = arith.constant dense<0.000000e+00> : vector<16xf32>
    %41 = vector.multi_reduction <add>, %40, %cst_13 [1] : vector<16x32xf32> to vector<16xf32>
    %42 = vector.shape_cast %41 : vector<16xf32> to vector<16x1xf32>
    %43 = vector.broadcast %24 : vector<1x1xf32> to vector<16x1xf32>
    %44 = arith.mulf %22, %43 : vector<16x1xf32>
    %45 = arith.subf %28, %44 : vector<16x1xf32>
    %cst_14 = arith.constant 0.0032258064 : f32
    %46 = vector.broadcast %cst_14 : f32 to vector<16x1xf32>
    %47 = arith.mulf %46, %45 : vector<16x1xf32>
    %48 = arith.mulf %42, %36 : vector<16x1xf32>
    %49 = arith.mulf %22, %42 : vector<16x1xf32>
    %50 = arith.subf %48, %49 : vector<16x1xf32>
    %cst_15 = arith.constant 0.896774172 : f32
    %51 = vector.broadcast %cst_15 : f32 to vector<16x1xf32>
    %52 = arith.mulf %51, %50 : vector<16x1xf32>
    %53 = arith.addf %47, %52 : vector<16x1xf32>
    %cst_16 = arith.constant 0.000000e+00 : f32
    %54 = vector.broadcast %cst_16 : f32 to vector<16x1xf32>
    %55 = arith.subf %54, %53 : vector<16x1xf32>
    %c0_17 = arith.constant 0 : index
    %c0_18 = arith.constant 0 : index
    %56 = vector.load %arg6[%c0_17, %c0_18] : memref<8x128xf32, #tpu.memory_space<vmem>>, vector<8x128xf32>
    %cst_19 = arith.constant 0.000000e+00 : f32
    %57 = vector.broadcast %cst_19 : f32 to vector<16x1xf32>
    %58 = arith.select %13, %55, %57 : vector<16x1xi1>, vector<16x1xf32>
    %59 = vector.shape_cast %58 : vector<16x1xf32> to vector<1x16x1xf32>
    %cst_20 = arith.constant dense<0.000000e+00> : vector<1xf32>
    %60 = vector.multi_reduction <add>, %59, %cst_20 [1, 2] : vector<1x16x1xf32> to vector<1xf32>
    %61 = vector.shape_cast %60 : vector<1xf32> to vector<1x1x1xf32>
    %62 = vector.extract %61[0, 0, 0] : f32 from vector<1x1x1xf32>
    %63 = vector.broadcast %62 : f32 to vector<8x128xf32>
    %64 = arith.addf %56, %63 : vector<8x128xf32>
    %c0_21 = arith.constant 0 : index
    %c0_22 = arith.constant 0 : index
    %65 = vector.load %arg6[%c0_21, %c0_22] : memref<8x128xf32, #tpu.memory_space<vmem>>, vector<8x128xf32>
    tpu.vector_store %arg6[%c0_21, %c0_22], %64 {strides = array<i32>} : memref<8x128xf32, #tpu.memory_space<vmem>>, vector<8x128xf32>,
    %c0_i32_23 = arith.constant 0 : i32
    %66 = arith.cmpi eq, %arg1, %c0_i32_23 : i32
    %67 = arith.extui %66 : i1 to i32
    %c0_i32_24 = arith.constant 0 : i32
    %68 = arith.cmpi ne, %67, %c0_i32_24 : i32
    scf.if %68 {
      %c0_25 = arith.constant 0 : index
      %c0_26 = arith.constant 0 : index
      %69 = vector.load %arg6[%c0_25, %c0_26] : memref<8x128xf32, #tpu.memory_space<vmem>>, vector<8x128xf32>
      %70 = vector.shape_cast %69 : vector<8x128xf32> to vector<1x8x128xf32>
      %c0_27 = arith.constant 0 : index
      %c0_28 = arith.constant 0 : index
      %c0_29 = arith.constant 0 : index
      %71 = vector.load %arg5[%c0_27, %c0_28, %c0_29] : memref<1x8x128xf32, #tpu.memory_space<vmem>>, vector<1x8x128xf32>
      tpu.vector_store %arg5[%c0_27, %c0_28, %c0_29], %70 {strides = array<i32>} : memref<1x8x128xf32, #tpu.memory_space<vmem>>, vector<1x8x128xf32>,
    } else {
    }
    return
  }
  func.func @transform_0(%arg0: i32, %arg1: i32) -> (i32, i32) {
    %c1_i32 = arith.constant 1 : i32
    %0 = arith.muli %arg0, %c1_i32 : i32
    %1 = arith.addi %0, %arg1 : i32
    %c0_i32 = arith.constant 0 : i32
    %2 = arith.minsi %1, %c0_i32 : i32
    %c0_i32_0 = arith.constant 0 : i32
    %c0_i32_1 = arith.constant 0 : i32
    return %2, %c0_i32_0 : i32, i32
  }
  func.func @transform_1(%arg0: i32, %arg1: i32) -> (i32, i32) {
    %c1_i32 = arith.constant 1 : i32
    %0 = arith.muli %arg0, %c1_i32 : i32
    %1 = arith.addi %0, %arg1 : i32
    %c0_i32 = arith.constant 0 : i32
    %2 = arith.minsi %1, %c0_i32 : i32
    %c0_i32_0 = arith.constant 0 : i32
    %c0_i32_1 = arith.constant 0 : i32
    return %2, %c0_i32_0 : i32, i32
  }
  func.func @transform_2(%arg0: i32, %arg1: i32) -> (i32, i32) {
    %c0_i32 = arith.constant 0 : i32
    %c0_i32_0 = arith.constant 0 : i32
    %c0_i32_1 = arith.constant 0 : i32
    return %c0_i32, %c0_i32_0 : i32, i32
  }
  func.func @transform_3(%arg0: i32, %arg1: i32) -> (i32, i32, i32) {
    %c0_i32 = arith.constant 0 : i32
    %c0_i32_0 = arith.constant 0 : i32
    %c0_i32_1 = arith.constant 0 : i32
    return %arg0, %c0_i32, %c0_i32_0 : i32, i32, i32
  }
}

</mosaic_0001>

<llo_original>
// kernel: tpu_custom_call.1
$region0: #{tpu_custom_call.1}
  #allocation0 [shape = 'u32[]', space=smem, size = 0x4, offset = 0x4, fixed_abs, tag = 'smem constant byte address 0x4 - core index']
  #allocation1 [shape = 'u32[144,128]{1,0:T(1,128)}', space=vmem, size = 0x12000, scoped, tag = 'internal scratch']
  #allocation2 [shape = 'f32[8,128]{1,0:T(8,128)}', space=vmem, size = 0x1000, scoped, tag = 'scratch operand']
  %s0 = inlined_call_operand.vmem [shape: f32[16,32], index: 0, kind: input, shape index: {}]
  %s1 = inlined_call_operand.vmem [shape: s32[16,1], index: 1, kind: input, shape index: {}]
  %s2 = inlined_call_operand.vmem [shape: f32[1,32], index: 2, kind: input, shape index: {}]
  %s3 = inlined_call_operand.hbm [shape: f32[1,8,128], index: 3, kind: output, shape index: {}]
  %s4 = sld [smem:[#allocation0]]
  $region30: #{tpu_custom_call.1} parent=0
    _
  %s6 = ssub.s32 1, %s4
  %s7 = scalar_select 0, %s6, %s4
  $region1: #{tpu_custom_call.1} parent=0
    #allocation3 [shape = 'u8[4096]{0}', space=vmem, size = 0x1000, scoped, tag = 'output window, operand 0, single buffered']
    #allocation4 [shape = 's32[1]{0}', space=sflag, size = 0x4, scoped, tag = 'scoped memory for tpu_custom_call.1']
    %8 = vsyncpa [#allocation4], 0
    // Predicated region
    $region2: #{tpu_custom_call.1} parent=1 // pred_check
      _
    $region3: #{tpu_custom_call.1} parent=1 // pred_check_branch
      %10 = sbr.rel (0) target = $region5
    $region4: #{tpu_custom_call.1} parent=1 // pred_region
      %s11 = sadd.s32 0, 0
      %p12 = scmp.lt.s32.totalorder %s11, 0
      %s13 = scalar_select %p12, %s11, 0
      %s14 = smul.u32 2, %s13
      %p15 = scmp.lt.s32.totalorder %s14, 1
      %s16 = scalar_select %p15, %s14, 1
      %s17 = smul.addr %s16, 8
      %s18 = scalar_lea.vmem %s0, %s17
      %s19 = sadd.s32 0, 0
      %p20 = scmp.lt.s32.totalorder %s19, 0
      %s21 = scalar_select %p20, %s19, 0
      %s22 = smul.u32 2, %s21
    $region5: #{tpu_custom_call.1} parent=1 // pred_fallthru
      _
    // Predicated region
    $region6: #{tpu_custom_call.1} parent=1 // pred_check
      _
    $region7: #{tpu_custom_call.1} parent=1 // pred_check_branch
      %24 = sbr.rel (0) target = $region9
    $region8: #{tpu_custom_call.1} parent=1 // pred_region
      %s25 = sadd.s32 0, 0
      %p26 = scmp.lt.s32.totalorder %s25, 0
      %s27 = scalar_select %p26, %s25, 0
      %s28 = smul.u32 2, %s27
      %p29 = scmp.lt.s32.totalorder %s28, 1
      %s30 = scalar_select %p29, %s28, 1
      %s31 = smul.addr %s30, 8
      %s32 = scalar_lea.vmem %s1, %s31
      %s33 = sadd.s32 0, 0
      %p34 = scmp.lt.s32.totalorder %s33, 0
      %s35 = scalar_select %p34, %s33, 0
      %s36 = smul.u32 2, %s35
    $region9: #{tpu_custom_call.1} parent=1 // pred_fallthru
      _
    // Predicated region
    $region10: #{tpu_custom_call.1} parent=1 // pred_check
      _
    $region11: #{tpu_custom_call.1} parent=1 // pred_check_branch
      %38 = sbr.rel (0) target = $region13
    $region12: #{tpu_custom_call.1} parent=1 // pred_region
      _
    $region13: #{tpu_custom_call.1} parent=1 // pred_fallthru
      _
    %s39 = sadd.s32 0, 0
    %p40 = scmp.lt.s32.totalorder %s39, 0
    %s41 = scalar_select %p40, %s39, 0
    %s42 = smul.u32 2, %s41
    %p43 = scmp.lt.s32.totalorder %s42, 1
    %s44 = scalar_select %p43, %s42, 1
    %s45 = smul.addr %s44, 8
    %s46 = scalar_lea.vmem %s0, %s45
    %s47 = sadd.s32 0, 0
    %p48 = scmp.lt.s32.totalorder %s47, 0
    %s49 = scalar_select %p48, %s47, 0
    %s50 = smul.u32 2, %s49
    %p51 = scmp.lt.s32.totalorder %s50, 1
    %s52 = scalar_select %p51, %s50, 1
    %s53 = smul.addr %s52, 8
    %s54 = scalar_lea.vmem %s1, %s53
    %s55 = sadd.s32 0, 0
    %p56 = scmp.lt.s32.totalorder %s55, 0
    %s57 = scalar_select %p56, %s55, 0
    %s58 = smul.u32 2, %s57
    %p59 = scmp.lt.s32.totalorder %s58, 1
    %s60 = scalar_select %p59, %s58, 1
    %s61 = smul.addr %s60, 8
    %s62 = scalar_lea.vmem %s0, %s61
    %s63 = sadd.s32 0, 0
    %p64 = scmp.lt.s32.totalorder %s63, 0
    %s65 = scalar_select %p64, %s63, 0
    %s66 = smul.u32 2, %s65
    %s67 = sadd.s32 0, 0
    %p68 = scmp.lt.s32.totalorder %s67, 0
    %s69 = scalar_select %p68, %s67, 0
    %s70 = smul.u32 2, %s69
    %p71 = scmp.lt.s32.totalorder %s70, 1
    %s72 = scalar_select %p71, %s70, 1
    %s73 = smul.addr %s72, 8
    %s74 = scalar_lea.vmem %s1, %s73
    %s75 = sadd.s32 0, 0
    %p76 = scmp.lt.s32.totalorder %s75, 0
    %s77 = scalar_select %p76, %s75, 0
    %s78 = smul.u32 2, %s77
    %p79 = scmp.eq.s32.totalorder 0, 0
    // Predicated region
    $region14: #{tpu_custom_call.1} parent=1 // pred_check
      %p80 = pneg %p79
    $region15: #{tpu_custom_call.1} parent=1 // pred_check_branch
      %82 = sbr.rel (%p80) target = $region17
    $region16: #{tpu_custom_call.1} parent=1 // pred_region
      %83 = vst [vmem:[#allocation2] sm:$0xff] 0.0
    $region17: #{tpu_custom_call.1} parent=1 // pred_fallthru
      _
    %v84 = vld [vmem:[%s62] sm:$0xff]
    %v85 = vld [vmem:[%s62 + $0x8] sm:$0xff]
    %v86 = vld [vmem:[%s2] sm:$0x1]
    %v87 = vld [vmem:[%s74] sm:$0xff]
    %v88 = vld [vmem:[%s74 + $0x8] sm:$0xff]
    %s89 = sadd.s32 0, 0
    %v90 = vlaneseq
    %v91 = vshrl.u32 %v90, 7
    %v92 = vadd.s32 %v91, 8
    %s93 = smul.u32 %s89, 16
    %v94 = vstv %s93
    %v95 = vadd.s32 %v94, %v91
    %v96 = vadd.s32 %v94, %v92
    %vm97 = vcmp.lt.s32.totalorder %v95, 16
    %vm98 = vcmp.lt.s32.totalorder %v96, 16
    %vm99 = vcmask 261120
    %v100 = vsel %vm99, %v84, -inf
    %101 = vmax.xlane.f32.xlu0 %v100
    %v102 = vpop.xlane.xlu0 %101
    %v103 = vsel %vm99, %v85, -inf
    %104 = vmax.xlane.f32.xlu0 %v103
    %v105 = vpop.xlane.xlu0 %104
    %v106 = vsub.f32 %v84, %v102
    %v107 = vsub.f32 %v85, %v105
    %v108 = vmul.f32 %v106, 1.442695
    %v109 = vpow.pop %v108
    %v110 = vmul.f32 %v107, 1.442695
    %v111 = vpow.pop %v110
    %v112 = vsel %vm99, %v109, 0.0
    %113 = vadd.xlane.f32.xlu0 %v112
    %v114 = vpop.xlane.xlu0 %113
    %v115 = vsel %vm99, %v111, 0.0
    %116 = vadd.xlane.f32.xlu0 %v115
    %v117 = vpop.xlane.xlu0 %116
    %v118 = vlog2.pop %v114
    %v119 = vmul.f32 %v118, 0.6931472
    %v120 = vlog2.pop %v117
    %v121 = vmul.f32 %v120, 0.6931472
    %v122 = vadd.f32 %v102, %v119
    %v123 = vadd.f32 %v105, %v121
    %vm124 = vcmask 253952
    %v125 = vsel %vm124, %v86, 0.0
    %126 = vadd.xlane.f32.xlu0 %v125
    %v127 = vpop.xlane.xlu0 %126
    %v129 = vlaneseq
    %v130 = vshrl.u32 %v129, 7
    %v131 = vsub.s32 0, %v130
    %v132 = vrot.slane %v86, %v131
    %v134 = vmul.f32 %v84, %v132
    %v135 = vmul.f32 %v85, %v132
    %v136 = vsel %vm99, %v134, 0.0
    %137 = vadd.xlane.f32.xlu0 %v136
    %v138 = vpop.xlane.xlu0 %137
    %v139 = vsel %vm99, %v135, 0.0
    %140 = vadd.xlane.f32.xlu0 %v139
    %v141 = vpop.xlane.xlu0 %140
    %v142 = vlaneseq
    %v143 = vand.u32 %v142, 127
    %144 = vset.pattern.permute.xlu0 0
    %145 = vperm.xlu0 %144, %v87
    %v146 = vpop.permute.xlu0 %145
    %147 = vset.pattern.permute.xlu0 0
    %148 = vperm.xlu0 %147, %v88
    %v149 = vpop.permute.xlu0 %148
    %vm150 = vcmp.eq.s32.totalorder %v143, %v146
    %vm151 = vcmp.eq.s32.totalorder %v143, %v149
    %v152 = vsel %vm150, %v84, 0.0
    %v153 = vsel %vm151, %v85, 0.0
    %v154 = vsel %vm99, %v152, 0.0
    %155 = vadd.xlane.f32.xlu0 %v154
    %v156 = vpop.xlane.xlu0 %155
    %v157 = vsel %vm99, %v153, 0.0
    %158 = vadd.xlane.f32.xlu0 %v157
    %v159 = vpop.xlane.xlu0 %158
    %v160 = vsel %vm150, %v132, 0.0
    %v161 = vsel %vm151, %v132, 0.0
    %v162 = vsel %vm99, %v160, 0.0
    %163 = vadd.xlane.f32.xlu0 %v162
    %v164 = vpop.xlane.xlu0 %163
    %v165 = vsel %vm99, %v161, 0.0
    %166 = vadd.xlane.f32.xlu0 %v165
    %v167 = vpop.xlane.xlu0 %166
    %v168 = vlaneseq
    %v169 = vshrl.u32 %v168, 7
    %v170 = vsub.s32 0, %v169
    %v171 = vrot.slane %v127, %v170
    %v172 = vmul.f32 %v122, %v171
    %v173 = vmul.f32 %v123, %v171
    %v174 = vsub.f32 %v138, %v172
    %v175 = vsub.f32 %v141, %v173
    %v176 = vmul.f32 %v174, 0.0032258064
    %v177 = vmul.f32 %v175, 0.0032258064
    %v178 = vmul.f32 %v164, %v156
    %v179 = vmul.f32 %v167, %v159
    %v180 = vmul.f32 %v122, %v164
    %v181 = vmul.f32 %v123, %v167
    %v182 = vsub.f32 %v178, %v180
    %v183 = vsub.f32 %v179, %v181
    %v184 = vmul.f32 %v182, 0.8967742
    %v185 = vmul.f32 %v183, 0.8967742
    %v186 = vadd.f32 %v176, %v184
    %v187 = vadd.f32 %v177, %v185
    %v188 = vsub.f32 0.0, %v186
    %v189 = vsub.f32 0.0, %v187
    %v190 = vld [vmem:[#allocation2] sm:$0xff]
    %v191 = vsel %vm97, %v188, 0.0
    %v192 = vsel %vm98, %v189, 0.0
    %vm193 = vcmask 7168
    %v194 = vsel %vm193, %v191, 0.0
    %v195 = vsel %vm193, %v192, 0.0
    %v196 = vadd.f32 %v194, %v195
    %197 = vadd.xlane.f32.xlu0 %v196
    %v198 = vpop.xlane.xlu0 %197
    %v199 = vrot.slane %v198, 4
    %v200 = vadd.f32 %v198, %v199
    %v201 = vrot.slane %v200, 2
    %v202 = vadd.f32 %v200, %v201
    %v203 = vrot.slane %v202, 1
    %v204 = vadd.f32 %v202, %v203
    %s205 = vtos %v204
    %v206 = vstv %s205
    %v207 = vadd.f32 %v190, %v206
    %208 = vst [vmem:[#allocation2] sm:$0xff] %v207
    // Predicated region
    $region18: #{tpu_custom_call.1} parent=1 // pred_check
      %p209 = pneg %p79
    $region19: #{tpu_custom_call.1} parent=1 // pred_check_branch
      %211 = sbr.rel (%p209) target = $region21
    $region20: #{tpu_custom_call.1} parent=1 // pred_region
      %v212 = vld [vmem:[#allocation2] sm:$0xff]
      %213 = vst [vmem:[#allocation3] sm:$0xff] %v212
    $region21: #{tpu_custom_call.1} parent=1 // pred_fallthru
      _
    // Predicated region
    $region22: #{tpu_custom_call.1} parent=1 // pred_check
      _
    $region23: #{tpu_custom_call.1} parent=1 // pred_check_branch
      %215 = sbr.rel (0) target = $region25
    $region24: #{tpu_custom_call.1} parent=1 // pred_region
      %s217 = ssub.s32 128, 128
      %218 = vsyncadd [#allocation4], %s217
      %s220 = sshll.u32 [#allocation3], 4
      %s221 = int_to_ptr.vmem [resolvable:$true] %s220
      %223 = dma.vmem_to_hbm [thread:$0]  %s221, 128, %s3, [#allocation4]
    $region25: #{tpu_custom_call.1} parent=1 // pred_fallthru
      _
    // Predicated region
    $region26: #{tpu_custom_call.1} parent=1 // pred_check
      _
    $region27: #{tpu_custom_call.1} parent=1 // pred_check_branch
      %225 = sbr.rel (0) target = $region29
    $region28: #{tpu_custom_call.1} parent=1 // pred_region
      %226 = dma.done [#allocation4], 128
    $region29: #{tpu_custom_call.1} parent=1 // pred_fallthru
      _
    %227 = vsyncpa [#allocation4], 1

</llo_original>
